<compile_context>
chip_gen: v5e
topology: v5e:2x2
jax: 0.10.0
libtpu: 0.0.40
codegen_flags: <defaults>
</compile_context>

<pallas_src>
import functools

import jax
import jax.numpy as jnp
from jax.experimental import pallas as pl
from jax.experimental.pallas import tpu as pltpu


def _round_up(x, m):
    return (x + m - 1) // m * m


def ff_layer_kernel(x_ref, gamma_ref, beta_ref, w_ref, b_ref, o_ref, *,
                    d_in, use_bf16_matmul, activation):
    # x_ref: (tm, D_in_pad) tile of rows.
    x = x_ref[...].astype(jnp.float32)
    d_in_pad = x.shape[-1]
    inv_d = 1.0 / d_in

    # LayerNorm over the (real) feature axis; eps matches nn.LayerNorm default.
    # Padded feature lanes hold zeros, so sum(x) already only covers real lanes.
    mean = jnp.sum(x, axis=-1, keepdims=True) * inv_d
    xm = x - mean
    if d_in_pad != d_in:
        # Mask padded lanes so they do not contaminate the variance.
        lane = jax.lax.broadcasted_iota(jnp.int32, (1, d_in_pad), 1)
        xm = jnp.where(lane < d_in, xm, 0.0)
    var = jnp.sum(xm * xm, axis=-1, keepdims=True) * inv_d  # biased variance
    normed = xm * jax.lax.rsqrt(var + 1e-5)
    normed = normed * gamma_ref[...].astype(jnp.float32) + beta_ref[...].astype(jnp.float32)

    # Linear: normed @ W^T + b  (w_ref already holds W^T tile: (D_in_pad, tn)).
    w = w_ref[...]
    if use_bf16_matmul:
        out = jnp.dot(normed.astype(jnp.bfloat16), w.astype(jnp.bfloat16),
                      preferred_element_type=jnp.float32)
    else:
        out = jnp.dot(normed, w.astype(jnp.float32),
                      preferred_element_type=jnp.float32)
    out = out + b_ref[...].astype(jnp.float32)

    if activation == "relu":
        out = jnp.maximum(out, 0.0)
    # activation == "linear": identity

    o_ref[...] = out.astype(o_ref.dtype)


def ff_layer(x, gamma, beta, weight, bias, *, activation="relu",
             tm=256, tn=256, use_bf16_matmul=True, single_buffer_consts=True):
    """x: (B, S, D_in). weight: (D_out, D_in) as in nn.Linear. Returns (B, S, D_out)."""
    if activation not in ("relu", "linear"):
        raise NotImplementedError(activation)

    B, S, D_in = x.shape
    D_out, D_in_w = weight.shape
    assert D_in_w == D_in
    N = B * S

    # Pad feature axes to lane multiples (128) and rows to the row-tile.
    d_in_pad = max(_round_up(D_in, 128), 128)
    d_out_pad = max(_round_up(D_out, 128), 128)

    tm_eff = _round_up(min(tm, _round_up(N, 8)), 8)
    n_pad = _round_up(N, tm_eff)
    tn_eff = tn if (tn % 128 == 0 and d_out_pad % tn == 0) else 128

    x2 = jnp.pad(x.reshape(N, D_in), ((0, n_pad - N), (0, d_in_pad - D_in)))
    w_t = jnp.pad(weight.T, ((0, d_in_pad - D_in), (0, d_out_pad - D_out)))
    gamma2 = jnp.pad(gamma.reshape(1, D_in), ((0, 0), (0, d_in_pad - D_in)))
    beta2 = jnp.pad(beta.reshape(1, D_in), ((0, 0), (0, d_in_pad - D_in)))
    bias2 = jnp.pad(bias.reshape(1, D_out), ((0, 0), (0, d_out_pad - D_out)))

    grid = (n_pad // tm_eff, d_out_pad // tn_eff)
    single_j = (d_out_pad == tn_eff)

    # Rough per-step VMEM estimate (double-buffered x/out, weight tile, consts).
    est = 4 * (2 * tm_eff * d_in_pad + 2 * tm_eff * tn_eff
               + 2 * d_in_pad * tn_eff + 2 * (2 * d_in_pad + tn_eff))
    vmem_limit = int(min(max(2 * est, 32 * 2**20), 64 * 2**20))

    kernel_fn = functools.partial(
        ff_layer_kernel, d_in=D_in, use_bf16_matmul=use_bf16_matmul,
        activation=activation)

    def build(single_buffer):
        def spec(shape, index_map, is_const):
            if single_buffer and is_const:
                return pl.BlockSpec(shape, index_map, pipeline_mode=pl.Buffered(1))
            return pl.BlockSpec(shape, index_map)

        in_specs = [
            pl.BlockSpec((tm_eff, d_in_pad), lambda i, j: (i, 0)),          # x rows
            spec((1, d_in_pad), lambda i, j: (0, 0), True),                 # gamma
            spec((1, d_in_pad), lambda i, j: (0, 0), True),                 # beta
            spec((d_in_pad, tn_eff), lambda i, j: (0, j), single_j),        # W^T
            spec((1, tn_eff), lambda i, j: (0, j), single_j),               # bias
        ]
        return pl.pallas_call(
            kernel_fn,
            out_shape=jax.ShapeDtypeStruct((n_pad, d_out_pad), x.dtype),
            grid_spec=pltpu.PrefetchScalarGridSpec(
                num_scalar_prefetch=0,
                grid=grid,
                in_specs=in_specs,
                out_specs=pl.BlockSpec((tm_eff, tn_eff), lambda i, j: (i, j)),
            ),
            compiler_params=pltpu.CompilerParams(
                dimension_semantics=("parallel", "arbitrary"),
                vmem_limit_bytes=vmem_limit,
            ),
        )

    try:
        out = build(single_buffer_consts)(x2, gamma2, beta2, w_t, bias2)
    except Exception:
        if not single_buffer_consts:
            raise
        # Fallback if this JAX build rejects single-buffered BlockSpecs.
        out = build(False)(x2, gamma2, beta2, w_t, bias2)

    return out[:N, :D_out].reshape(B, S, D_out)


def reference_ff_layer(x, gamma, beta, weight, bias, activation="relu"):
    """Plain-JAX reference matching the PyTorch FFLayer forward."""
    x32 = x.astype(jnp.float32)
    mean = jnp.mean(x32, axis=-1, keepdims=True)
    var = jnp.mean((x32 - mean) ** 2, axis=-1, keepdims=True)
    normed = (x32 - mean) / jnp.sqrt(var + 1e-5) * gamma + beta
    out = normed @ weight.T + bias
    if activation == "relu":
        out = jnp.maximum(out, 0.0)
    return out.astype(x.dtype)


if __name__ == "__main__":
    key = jax.random.PRNGKey(0)
    k_x, k_w, k_b, k_g, k_bt = jax.random.split(key, 5)

    B, S = 2, 8
    input_size, output_size = 32, 32

    x = jax.random.normal(k_x, (B, S, input_size), dtype=jnp.float32)

    # Deterministic synthetic parameters (shapes from nn.Linear / nn.LayerNorm).
    weight = jax.random.normal(k_w, (output_size, input_size), jnp.float32) * 0.1
    bias = jax.random.normal(k_b, (output_size,), jnp.float32) * 0.1
    gamma = jnp.ones((input_size,), jnp.float32) + 0.01 * jax.random.normal(
        k_g, (input_size,), jnp.float32)
    beta = 0.01 * jax.random.normal(k_bt, (input_size,), jnp.float32)

    ref = reference_ff_layer(x, gamma, beta, weight, bias)

    # Pure-f32 GEMM path: tight tolerance for validation.
    out_f32 = ff_layer(x, gamma, beta, weight, bias, use_bf16_matmul=False)
    out_f32 = jax.block_until_ready(out_f32)
    assert out_f32.shape == (B, S, output_size)
    assert jnp.allclose(out_f32, ref, atol=1e-4, rtol=1e-4), "f32 path mismatch"

    # Default fast path: bf16 GEMM operands, f32 accumulation -> looser tolerance.
    out_bf16 = ff_layer(x, gamma, beta, weight, bias)
    out_bf16 = jax.block_until_ready(out_bf16)
    assert out_bf16.shape == (B, S, output_size)
    assert jnp.allclose(out_bf16, ref, atol=3e-2, rtol=3e-2), "bf16 path mismatch"

    print("KERNEL_OK")
</pallas_src>

<mosaic_0001>
module attributes {stable_mosaic.version = 11 : i64} {
  func.func @ff_layer_kernel(%arg0: i32, %arg1: i32, %arg2: memref<16x128xf32, #tpu.memory_space<vmem>>, %arg3: memref<1x128xf32, #tpu.memory_space<vmem>>, %arg4: memref<1x128xf32, #tpu.memory_space<vmem>>, %arg5: memref<128x128xf32, #tpu.memory_space<vmem>>, %arg6: memref<1x128xf32, #tpu.memory_space<vmem>>, %arg7: memref<16x128xf32, #tpu.memory_space<vmem>>) attributes {dimension_semantics = [#tpu.dimension_semantics<parallel>, #tpu.dimension_semantics<arbitrary>], iteration_bounds = array<i64: 1, 1>, scalar_prefetch = 0 : i64, scratch_operands = 0 : i64, tpu.core_type = #tpu.core_type<tc>, window_params = [{transform_indices = @transform_0, window_bounds = array<i64: 16, 128>}, {pipeline_mode = #tpu.pipeline_mode<synchronous>, transform_indices = @transform_1, window_bounds = array<i64: 1, 128>}, {pipeline_mode = #tpu.pipeline_mode<synchronous>, transform_indices = @transform_2, window_bounds = array<i64: 1, 128>}, {pipeline_mode = #tpu.pipeline_mode<synchronous>, transform_indices = @transform_3, window_bounds = array<i64: 128, 128>}, {pipeline_mode = #tpu.pipeline_mode<synchronous>, transform_indices = @transform_4, window_bounds = array<i64: 1, 128>}, {transform_indices = @transform_5, window_bounds = array<i64: 16, 128>}]} {
    %c0 = arith.constant 0 : index
    %c0_0 = arith.constant 0 : index
    %0 = vector.load %arg2[%c0, %c0_0] : memref<16x128xf32, #tpu.memory_space<vmem>>, vector<16x128xf32>
    %cst = arith.constant dense<0.000000e+00> : vector<16xf32>
    %1 = vector.multi_reduction <add>, %0, %cst [1] : vector<16x128xf32> to vector<16xf32>
    %2 = vector.shape_cast %1 : vector<16xf32> to vector<16x1xf32>
    %cst_1 = arith.constant 3.125000e-02 : f32
    %3 = vector.broadcast %cst_1 : f32 to vector<16x1xf32>
    %4 = arith.mulf %2, %3 : vector<16x1xf32>
    %5 = vector.broadcast %4 : vector<16x1xf32> to vector<16x128xf32>
    %6 = arith.subf %0, %5 : vector<16x128xf32>
    %7 = tpu.iota {dimensions = array<i32: 1>} : vector<1x128xi32>
    %c32_i32 = arith.constant 32 : i32
    %8 = vector.broadcast %c32_i32 : i32 to vector<1x128xi32>
    %9 = arith.cmpi slt, %7, %8 : vector<1x128xi32>
    %cst_2 = arith.constant 0.000000e+00 : f32
    %10 = vector.shape_cast %9 : vector<1x128xi1> to vector<1x128xi1>
    %11 = vector.broadcast %10 : vector<1x128xi1> to vector<16x128xi1>
    %12 = vector.broadcast %cst_2 : f32 to vector<16x128xf32>
    %13 = arith.select %11, %6, %12 : vector<16x128xi1>, vector<16x128xf32>
    %14 = arith.mulf %13, %13 : vector<16x128xf32>
    %cst_3 = arith.constant dense<0.000000e+00> : vector<16xf32>
    %15 = vector.multi_reduction <add>, %14, %cst_3 [1] : vector<16x128xf32> to vector<16xf32>
    %16 = vector.shape_cast %15 : vector<16xf32> to vector<16x1xf32>
    %cst_4 = arith.constant 3.125000e-02 : f32
    %17 = vector.broadcast %cst_4 : f32 to vector<16x1xf32>
    %18 = arith.mulf %16, %17 : vector<16x1xf32>
    %cst_5 = arith.constant 9.99999974E-6 : f32
    %19 = vector.broadcast %cst_5 : f32 to vector<16x1xf32>
    %20 = arith.addf %18, %19 : vector<16x1xf32>
    %21 = math.rsqrt %20 : vector<16x1xf32>
    %22 = vector.broadcast %21 : vector<16x1xf32> to vector<16x128xf32>
    %23 = arith.mulf %13, %22 : vector<16x128xf32>
    %c0_6 = arith.constant 0 : index
    %c0_7 = arith.constant 0 : index
    %24 = vector.load %arg3[%c0_6, %c0_7] : memref<1x128xf32, #tpu.memory_space<vmem>>, vector<1x128xf32>
    %25 = vector.broadcast %24 : vector<1x128xf32> to vector<16x128xf32>
    %26 = arith.mulf %23, %25 : vector<16x128xf32>
    %c0_8 = arith.constant 0 : index
    %c0_9 = arith.constant 0 : index
    %27 = vector.load %arg4[%c0_8, %c0_9] : memref<1x128xf32, #tpu.memory_space<vmem>>, vector<1x128xf32>
    %28 = vector.broadcast %27 : vector<1x128xf32> to vector<16x128xf32>
    %29 = arith.addf %26, %28 : vector<16x128xf32>
    %c0_10 = arith.constant 0 : index
    %c0_11 = arith.constant 0 : index
    %30 = vector.load %arg5[%c0_10, %c0_11] : memref<128x128xf32, #tpu.memory_space<vmem>>, vector<128x128xf32>
    %cst_12 = arith.constant dense<0.000000e+00> : vector<16x128xf32>
    %31 = tpu.matmul %29, %30, %cst_12 {dimension_numbers = #tpu.dot_dimension_numbers<[1], [0], [0], [1], [0, 0, 1, 1], [], []>} : vector<16x128xf32>, vector<128x128xf32>, vector<16x128xf32> -> vector<16x128xf32>
    %c0_13 = arith.constant 0 : index
    %c0_14 = arith.constant 0 : index
    %32 = vector.load %arg6[%c0_13, %c0_14] : memref<1x128xf32, #tpu.memory_space<vmem>>, vector<1x128xf32>
    %33 = vector.broadcast %32 : vector<1x128xf32> to vector<16x128xf32>
    %34 = arith.addf %31, %33 : vector<16x128xf32>
    %cst_15 = arith.constant 0.000000e+00 : f32
    %35 = vector.broadcast %cst_15 : f32 to vector<16x128xf32>
    %36 = arith.maximumf %34, %35 : vector<16x128xf32>
    %c0_16 = arith.constant 0 : index
    %c0_17 = arith.constant 0 : index
    %37 = vector.load %arg7[%c0_16, %c0_17] : memref<16x128xf32, #tpu.memory_space<vmem>>, vector<16x128xf32>
    tpu.vector_store %arg7[%c0_16, %c0_17], %36 {strides = array<i32>} : memref<16x128xf32, #tpu.memory_space<vmem>>, vector<16x128xf32>,
    return
  }
  func.func @transform_0(%arg0: i32, %arg1: i32) -> (i32, i32) {
    %c0_i32 = arith.constant 0 : i32
    %c0_i32_0 = arith.constant 0 : i32
    return %arg0, %c0_i32 : i32, i32
  }
  func.func @transform_1(%arg0: i32, %arg1: i32) -> (i32, i32) {
    %c0_i32 = arith.constant 0 : i32
    %c0_i32_0 = arith.constant 0 : i32
    %c0_i32_1 = arith.constant 0 : i32
    return %c0_i32, %c0_i32_0 : i32, i32
  }
  func.func @transform_2(%arg0: i32, %arg1: i32) -> (i32, i32) {
    %c0_i32 = arith.constant 0 : i32
    %c0_i32_0 = arith.constant 0 : i32
    %c0_i32_1 = arith.constant 0 : i32
    return %c0_i32, %c0_i32_0 : i32, i32
  }
  func.func @transform_3(%arg0: i32, %arg1: i32) -> (i32, i32) {
    %c0_i32 = arith.constant 0 : i32
    %c0_i32_0 = arith.constant 0 : i32
    return %c0_i32, %arg1 : i32, i32
  }
  func.func @transform_4(%arg0: i32, %arg1: i32) -> (i32, i32) {
    %c0_i32 = arith.constant 0 : i32
    %c0_i32_0 = arith.constant 0 : i32
    return %c0_i32, %arg1 : i32, i32
  }
  func.func @transform_5(%arg0: i32, %arg1: i32) -> (i32, i32) {
    %c0_i32 = arith.constant 0 : i32
    return %arg0, %arg1 : i32, i32
  }
}

module attributes {stable_mosaic.version = 11 : i64} {
  func.func @ff_layer_kernel(%arg0: i32, %arg1: i32, %arg2: memref<16x128xf32, #tpu.memory_space<vmem>>, %arg3: memref<1x128xf32, #tpu.memory_space<vmem>>, %arg4: memref<1x128xf32, #tpu.memory_space<vmem>>, %arg5: memref<128x128xf32, #tpu.memory_space<vmem>>, %arg6: memref<1x128xf32, #tpu.memory_space<vmem>>, %arg7: memref<16x128xf32, #tpu.memory_space<vmem>>) attributes {dimension_semantics = [#tpu.dimension_semantics<parallel>, #tpu.dimension_semantics<arbitrary>], iteration_bounds = array<i64: 1, 1>, scalar_prefetch = 0 : i64, scratch_operands = 0 : i64, tpu.core_type = #tpu.core_type<tc>, window_params = [{transform_indices = @transform_0, window_bounds = array<i64: 16, 128>}, {pipeline_mode = #tpu.pipeline_mode<synchronous>, transform_indices = @transform_1, window_bounds = array<i64: 1, 128>}, {pipeline_mode = #tpu.pipeline_mode<synchronous>, transform_indices = @transform_2, window_bounds = array<i64: 1, 128>}, {transform_indices = @transform_3, window_bounds = array<i64: 128, 128>}, {transform_indices = @transform_4, window_bounds = array<i64: 1, 128>}, {transform_indices = @transform_5, window_bounds = array<i64: 16, 128>}]} {
    %c0 = arith.constant 0 : index
    %c0_0 = arith.constant 0 : index
    %0 = vector.load %arg2[%c0, %c0_0] : memref<16x128xf32, #tpu.memory_space<vmem>>, vector<16x128xf32>
    %cst = arith.constant dense<0.000000e+00> : vector<16xf32>
    %1 = vector.multi_reduction <add>, %0, %cst [1] : vector<16x128xf32> to vector<16xf32>
    %2 = vector.shape_cast %1 : vector<16xf32> to vector<16x1xf32>
    %cst_1 = arith.constant 3.125000e-02 : f32
    %3 = vector.broadcast %cst_1 : f32 to vector<16x1xf32>
    %4 = arith.mulf %2, %3 : vector<16x1xf32>
    %5 = vector.broadcast %4 : vector<16x1xf32> to vector<16x128xf32>
    %6 = arith.subf %0, %5 : vector<16x128xf32>
    %7 = tpu.iota {dimensions = array<i32: 1>} : vector<1x128xi32>
    %c32_i32 = arith.constant 32 : i32
    %8 = vector.broadcast %c32_i32 : i32 to vector<1x128xi32>
    %9 = arith.cmpi slt, %7, %8 : vector<1x128xi32>
    %cst_2 = arith.constant 0.000000e+00 : f32
    %10 = vector.shape_cast %9 : vector<1x128xi1> to vector<1x128xi1>
    %11 = vector.broadcast %10 : vector<1x128xi1> to vector<16x128xi1>
    %12 = vector.broadcast %cst_2 : f32 to vector<16x128xf32>
    %13 = arith.select %11, %6, %12 : vector<16x128xi1>, vector<16x128xf32>
    %14 = arith.mulf %13, %13 : vector<16x128xf32>
    %cst_3 = arith.constant dense<0.000000e+00> : vector<16xf32>
    %15 = vector.multi_reduction <add>, %14, %cst_3 [1] : vector<16x128xf32> to vector<16xf32>
    %16 = vector.shape_cast %15 : vector<16xf32> to vector<16x1xf32>
    %cst_4 = arith.constant 3.125000e-02 : f32
    %17 = vector.broadcast %cst_4 : f32 to vector<16x1xf32>
    %18 = arith.mulf %16, %17 : vector<16x1xf32>
    %cst_5 = arith.constant 9.99999974E-6 : f32
    %19 = vector.broadcast %cst_5 : f32 to vector<16x1xf32>
    %20 = arith.addf %18, %19 : vector<16x1xf32>
    %21 = math.rsqrt %20 : vector<16x1xf32>
    %22 = vector.broadcast %21 : vector<16x1xf32> to vector<16x128xf32>
    %23 = arith.mulf %13, %22 : vector<16x128xf32>
    %c0_6 = arith.constant 0 : index
    %c0_7 = arith.constant 0 : index
    %24 = vector.load %arg3[%c0_6, %c0_7] : memref<1x128xf32, #tpu.memory_space<vmem>>, vector<1x128xf32>
    %25 = vector.broadcast %24 : vector<1x128xf32> to vector<16x128xf32>
    %26 = arith.mulf %23, %25 : vector<16x128xf32>
    %c0_8 = arith.constant 0 : index
    %c0_9 = arith.constant 0 : index
    %27 = vector.load %arg4[%c0_8, %c0_9] : memref<1x128xf32, #tpu.memory_space<vmem>>, vector<1x128xf32>
    %28 = vector.broadcast %27 : vector<1x128xf32> to vector<16x128xf32>
    %29 = arith.addf %26, %28 : vector<16x128xf32>
    %c0_10 = arith.constant 0 : index
    %c0_11 = arith.constant 0 : index
    %30 = vector.load %arg5[%c0_10, %c0_11] : memref<128x128xf32, #tpu.memory_space<vmem>>, vector<128x128xf32>
    %cst_12 = arith.constant dense<0.000000e+00> : vector<16x128xf32>
    %31 = tpu.matmul %29, %30, %cst_12 {dimension_numbers = #tpu.dot_dimension_numbers<[1], [0], [0], [1], [0, 0, 1, 1], [], []>} : vector<16x128xf32>, vector<128x128xf32>, vector<16x128xf32> -> vector<16x128xf32>
    %c0_13 = arith.constant 0 : index
    %c0_14 = arith.constant 0 : index
    %32 = vector.load %arg6[%c0_13, %c0_14] : memref<1x128xf32, #tpu.memory_space<vmem>>, vector<1x128xf32>
    %33 = vector.broadcast %32 : vector<1x128xf32> to vector<16x128xf32>
    %34 = arith.addf %31, %33 : vector<16x128xf32>
    %cst_15 = arith.constant 0.000000e+00 : f32
    %35 = vector.broadcast %cst_15 : f32 to vector<16x128xf32>
    %36 = arith.maximumf %34, %35 : vector<16x128xf32>
    %c0_16 = arith.constant 0 : index
    %c0_17 = arith.constant 0 : index
    %37 = vector.load %arg7[%c0_16, %c0_17] : memref<16x128xf32, #tpu.memory_space<vmem>>, vector<16x128xf32>
    tpu.vector_store %arg7[%c0_16, %c0_17], %36 {strides = array<i32>} : memref<16x128xf32, #tpu.memory_space<vmem>>, vector<16x128xf32>,
    return
  }
  func.func @transform_0(%arg0: i32, %arg1: i32) -> (i32, i32) {
    %c0_i32 = arith.constant 0 : i32
    %c0_i32_0 = arith.constant 0 : i32
    return %arg0, %c0_i32 : i32, i32
  }
  func.func @transform_1(%arg0: i32, %arg1: i32) -> (i32, i32) {
    %c0_i32 = arith.constant 0 : i32
    %c0_i32_0 = arith.constant 0 : i32
    %c0_i32_1 = arith.constant 0 : i32
    return %c0_i32, %c0_i32_0 : i32, i32
  }
  func.func @transform_2(%arg0: i32, %arg1: i32) -> (i32, i32) {
    %c0_i32 = arith.constant 0 : i32
    %c0_i32_0 = arith.constant 0 : i32
    %c0_i32_1 = arith.constant 0 : i32
    return %c0_i32, %c0_i32_0 : i32, i32
  }
  func.func @transform_3(%arg0: i32, %arg1: i32) -> (i32, i32) {
    %c0_i32 = arith.constant 0 : i32
    %c0_i32_0 = arith.constant 0 : i32
    return %c0_i32, %arg1 : i32, i32
  }
  func.func @transform_4(%arg0: i32, %arg1: i32) -> (i32, i32) {
    %c0_i32 = arith.constant 0 : i32
    %c0_i32_0 = arith.constant 0 : i32
    return %c0_i32, %arg1 : i32, i32
  }
  func.func @transform_5(%arg0: i32, %arg1: i32) -> (i32, i32) {
    %c0_i32 = arith.constant 0 : i32
    return %arg0, %arg1 : i32, i32
  }
}

</mosaic_0001>

<llo_original>
// kernel: tpu_custom_call.1
$region0: #{tpu_custom_call.1}
  #allocation0 [shape = 'u32[]', space=smem, size = 0x4, offset = 0x4, fixed_abs, tag = 'smem constant byte address 0x4 - core index']
  #allocation1 [shape = 'u32[72,128]{1,0:T(1,128)}', space=vmem, size = 0x9000, scoped, tag = 'internal scratch']
  %s0 = inlined_call_operand.hbm [shape: f32[16,128], index: 0, kind: input, shape index: {}]
  %s1 = inlined_call_operand.hbm [shape: f32[1,128], index: 1, kind: input, shape index: {}]
  %s2 = inlined_call_operand.vmem [shape: f32[1,128], index: 2, kind: input, shape index: {}]
  %s3 = inlined_call_operand.hbm [shape: f32[128,128], index: 3, kind: input, shape index: {}]
  %s4 = inlined_call_operand.vmem [shape: f32[1,128], index: 4, kind: input, shape index: {}]
  %s5 = inlined_call_operand.hbm [shape: f32[16,128], index: 5, kind: output, shape index: {}]
  %s6 = sld [smem:[#allocation0]]
  $region42: #{tpu_custom_call.1} parent=0
    _
  %s8 = ssub.s32 1, %s6
  %s9 = scalar_select 0, %s8, %s6
  $region1: #{tpu_custom_call.1} parent=0
    #allocation2 [shape = 'u8[8192]{0}', space=vmem, size = 0x2000, scoped, tag = 'input window, operand 0, single buffered']
    #allocation3 [shape = 's32[1]{0}', space=sflag, size = 0x4, scoped, tag = 'scoped memory for tpu_custom_call.1']
    #allocation4 [shape = 's32[1]{0}', space=sflag, size = 0x4, scoped, tag = 'scoped memory for tpu_custom_call.1']
    #allocation5 [shape = 'u8[512]{0}', space=vmem, size = 0x400, scoped, tag = 'input window, operand 1, single buffered']
    #allocation6 [shape = 's32[1]{0}', space=sflag, size = 0x4, scoped, tag = 'scoped memory for tpu_custom_call.1']
    #allocation7 [shape = 'u8[65536]{0}', space=vmem, size = 0x10000, scoped, tag = 'input window, operand 3, single buffered']
    #allocation8 [shape = 'u8[8192]{0}', space=vmem, size = 0x2000, scoped, tag = 'output window, operand 0, single buffered']
    %10 = vsyncpa [#allocation3], 0
    %11 = vsyncpa [#allocation6], 0
    %12 = vsyncpa [#allocation4], 0
    // Predicated region
    $region2: #{tpu_custom_call.1} parent=1 // pred_check
      _
    $region3: #{tpu_custom_call.1} parent=1 // pred_check_branch
      %14 = sbr.rel (0) target = $region5
    $region4: #{tpu_custom_call.1} parent=1 // pred_region
      %16 = vsyncadd [#allocation3], 0
      %s17 = sshll.u32 %s0, 4
      %s18 = int_to_ptr.hbm [resolvable:$true] %s17
      %s19 = sshll.u32 [#allocation2], 4
      %s20 = int_to_ptr.vmem [resolvable:$true] %s19
      %25 = dma.hbm_to_vmem [thread:$0]  %s18, 256, %s20, [#allocation3], 128, 128, 8
    $region5: #{tpu_custom_call.1} parent=1 // pred_fallthru
      _
    // Predicated region
    $region6: #{tpu_custom_call.1} parent=1 // pred_check
      _
    $region7: #{tpu_custom_call.1} parent=1 // pred_check_branch
      %27 = sbr.rel (0) target = $region9
    $region8: #{tpu_custom_call.1} parent=1 // pred_region
      %29 = vsyncadd [#allocation6], 0
      %s31 = sshll.u32 %s1, 4
      %s32 = int_to_ptr.hbm [resolvable:$true] %s31
      %s33 = sshll.u32 [#allocation5], 4
      %s34 = int_to_ptr.vmem [resolvable:$true] %s33
      %36 = dma.hbm_to_vmem [thread:$0]  %s32, 16, %s34, [#allocation6]
    $region9: #{tpu_custom_call.1} parent=1 // pred_fallthru
      _
    // Predicated region
    $region10: #{tpu_custom_call.1} parent=1 // pred_check
      _
    $region11: #{tpu_custom_call.1} parent=1 // pred_check_branch
      %38 = sbr.rel (0) target = $region13
    $region12: #{tpu_custom_call.1} parent=1 // pred_region
      _
    $region13: #{tpu_custom_call.1} parent=1 // pred_fallthru
      _
    // Predicated region
    $region14: #{tpu_custom_call.1} parent=1 // pred_check
      _
    $region15: #{tpu_custom_call.1} parent=1 // pred_check_branch
      %40 = sbr.rel (0) target = $region17
    $region16: #{tpu_custom_call.1} parent=1 // pred_region
      %42 = vsyncadd [#allocation6], 0
      %s43 = sshll.u32 %s3, 4
      %s44 = int_to_ptr.hbm [resolvable:$true] %s43
      %s45 = sshll.u32 [#allocation7], 4
      %s46 = int_to_ptr.vmem [resolvable:$true] %s45
      %51 = dma.hbm_to_vmem [thread:$0]  %s44, 2048, %s46, [#allocation6], 128, 128, 8
    $region17: #{tpu_custom_call.1} parent=1 // pred_fallthru
      _
    // Predicated region
    $region18: #{tpu_custom_call.1} parent=1 // pred_check
      _
    $region19: #{tpu_custom_call.1} parent=1 // pred_check_branch
      %53 = sbr.rel (0) target = $region21
    $region20: #{tpu_custom_call.1} parent=1 // pred_region
      _
    $region21: #{tpu_custom_call.1} parent=1 // pred_fallthru
      _
    // Predicated region
    $region22: #{tpu_custom_call.1} parent=1 // pred_check
      _
    $region23: #{tpu_custom_call.1} parent=1 // pred_check_branch
      %55 = sbr.rel (0) target = $region25
    $region24: #{tpu_custom_call.1} parent=1 // pred_region
      %57 = dma.done [#allocation3], 256
    $region25: #{tpu_custom_call.1} parent=1 // pred_fallthru
      _
    // Predicated region
    $region26: #{tpu_custom_call.1} parent=1 // pred_check
      _
    $region27: #{tpu_custom_call.1} parent=1 // pred_check_branch
      %59 = sbr.rel (0) target = $region29
    $region28: #{tpu_custom_call.1} parent=1 // pred_region
      %61 = dma.done [#allocation6], 16
    $region29: #{tpu_custom_call.1} parent=1 // pred_fallthru
      _
    // Predicated region
    $region30: #{tpu_custom_call.1} parent=1 // pred_check
      _
    $region31: #{tpu_custom_call.1} parent=1 // pred_check_branch
      %63 = sbr.rel (0) target = $region33
    $region32: #{tpu_custom_call.1} parent=1 // pred_region
      %65 = dma.done [#allocation6], 2048
    $region33: #{tpu_custom_call.1} parent=1 // pred_fallthru
      _
    %v66 = vld [vmem:[#allocation2] sm:$0xff]
    %v67 = vld [vmem:[#allocation2 + $0x8] sm:$0xff]
    %68 = vadd.xlane.f32.xlu0 %v66
    %v69 = vpop.xlane.xlu0 %68
    %70 = vadd.xlane.f32.xlu0 %v67
    %v71 = vpop.xlane.xlu0 %70
    %v72 = vmul.f32 %v69, 0.03125
    %v73 = vmul.f32 %v71, 0.03125
    %v74 = vsub.f32 %v66, %v72
    %v75 = vsub.f32 %v67, %v73
    %v76 = vlaneseq
    %v77 = vand.u32 %v76, 127
    %vm78 = vcmp.lt.s32.totalorder %v77, 32
    %v79 = vsel %vm78, 1, 0
    %vm80 = vcmp.eq.s32.totalorder %v79, 1
    %v81 = vsel %vm80, %v74, 0.0
    %v82 = vsel %vm80, %v75, 0.0
    %v83 = vmul.f32 %v81, %v81
    %v84 = vmul.f32 %v82, %v82
    %85 = vadd.xlane.f32.xlu0 %v83
    %v86 = vpop.xlane.xlu0 %85
    %87 = vadd.xlane.f32.xlu0 %v84
    %v88 = vpop.xlane.xlu0 %87
    %v89 = vmul.f32 %v86, 0.03125
    %v90 = vmul.f32 %v88, 0.03125
    %v91 = vadd.f32 %v89, 1e-05
    %v92 = vadd.f32 %v90, 1e-05
    %v93 = vrsqrt.pop %v91
    %v94 = vmul.f32 %v93, %v91
    %v95 = vmul.f32 %v94, %v93
    %v96 = vmul.f32 0.5, %v95
    %v97 = vsub.f32 1.5, %v96
    %v98 = vmul.f32 %v93, %v97
    %vm99 = vweird.f32 %v91
    %vm100 = vweird.f32 %v93
    %vm101 = vmor %vm99, %vm100
    %v102 = vsel %vm101, %v93, %v98
    %v103 = vrsqrt.pop %v92
    %v104 = vmul.f32 %v103, %v92
    %v105 = vmul.f32 %v104, %v103
    %v106 = vmul.f32 0.5, %v105
    %v107 = vsub.f32 1.5, %v106
    %v108 = vmul.f32 %v103, %v107
    %vm109 = vweird.f32 %v92
    %vm110 = vweird.f32 %v103
    %vm111 = vmor %vm109, %vm110
    %v112 = vsel %vm111, %v103, %v108
    %v113 = vmul.f32 %v81, %v102
    %v114 = vmul.f32 %v82, %v112
    %v115 = vld [vmem:[#allocation5] sm:$0x1]
    %v117 = vperm.slane %v115, 0
    %v119 = vmul.f32 %v113, %v117
    %v120 = vmul.f32 %v114, %v117
    %v121 = vld [vmem:[%s2] sm:$0x1]
    %v123 = vperm.slane %v121, 0
    %v125 = vadd.f32 %v119, %v123
    %v126 = vadd.f32 %v120, %v123
    %v127 = vld [vmem:[#allocation7] sm:$0xff]
    %v128 = vld [vmem:[#allocation7 + $0x8] sm:$0xff]
    %v129 = vld [vmem:[#allocation7 + $0x10] sm:$0xff]
    %v130 = vld [vmem:[#allocation7 + $0x18] sm:$0xff]
    %v131 = vld [vmem:[#allocation7 + $0x20] sm:$0xff]
    %v132 = vld [vmem:[#allocation7 + $0x28] sm:$0xff]
    %v133 = vld [vmem:[#allocation7 + $0x30] sm:$0xff]
    %v134 = vld [vmem:[#allocation7 + $0x38] sm:$0xff]
    %v135 = vld [vmem:[#allocation7 + $0x40] sm:$0xff]
    %v136 = vld [vmem:[#allocation7 + $0x48] sm:$0xff]
    %v137 = vld [vmem:[#allocation7 + $0x50] sm:$0xff]
    %v138 = vld [vmem:[#allocation7 + $0x58] sm:$0xff]
    %v139 = vld [vmem:[#allocation7 + $0x60] sm:$0xff]
    %v140 = vld [vmem:[#allocation7 + $0x68] sm:$0xff]
    %v141 = vld [vmem:[#allocation7 + $0x70] sm:$0xff]
    %v142 = vld [vmem:[#allocation7 + $0x78] sm:$0xff]
    %v143 = vld [vmem:[%s4] sm:$0x1]
    %v145 = vperm.slane %v143, 0
    %147 = vmatpush.msra.mxu0 %v142
    %148 = vmatpush.msra.mxu0 %v141
    %149 = vmatpush.msra.mxu0 %v140
    %150 = vmatpush.msra.mxu0 %v139
    %151 = vmatpush.msra.mxu0 %v138
    %152 = vmatpush.msra.mxu0 %v137
    %153 = vmatpush.msra.mxu0 %v136
    %154 = vmatpush.msra.mxu0 %v135
    %155 = vmatpush.msra.mxu0 %v134
    %156 = vmatpush.msra.mxu0 %v133
    %157 = vmatpush.msra.mxu0 %v132
    %158 = vmatpush.msra.mxu0 %v131
    %159 = vmatpush.msra.mxu0 %v130
    %160 = vmatpush.msra.mxu0 %v129
    %161 = vmatpush.msra.mxu0 %v128
    %162 = vmatpush.msra.mxu0 %v127
    %163 = vmatmul.f32.gmra.mxu0 %v125
    %v164 = vpop.f32.mrf.mxu0
    %v165 = vadd.f32 %v145, %v164
    %166 = vmatmul.f32.gmra.mxu0 %v126
    %v167 = vpop.f32.mrf.mxu0
    %v168 = vadd.f32 %v145, %v167
    %169 = vdwg.mxu0
    %v170 = vmax.f32 %v165, 0.0
    %v171 = vmax.f32 %v168, 0.0
    %172 = vst [vmem:[#allocation8] sm:$0xff] %v170
    %173 = vst [vmem:[#allocation8 + $0x8] sm:$0xff] %v171
    // Predicated region
    $region34: #{tpu_custom_call.1} parent=1 // pred_check
      _
    $region35: #{tpu_custom_call.1} parent=1 // pred_check_branch
      %175 = sbr.rel (0) target = $region37
    $region36: #{tpu_custom_call.1} parent=1 // pred_region
      %177 = vsyncadd [#allocation4], 0
      %s178 = sshll.u32 [#allocation8], 4
      %s179 = int_to_ptr.vmem [resolvable:$true] %s178
      %s180 = sshll.u32 %s5, 4
      %s181 = int_to_ptr.hbm [resolvable:$true] %s180
      %186 = dma.vmem_to_hbm [thread:$0]  %s179, 256, %s181, [#allocation4], 128, 128, 8
    $region37: #{tpu_custom_call.1} parent=1 // pred_fallthru
      _
    // Predicated region
    $region38: #{tpu_custom_call.1} parent=1 // pred_check
      _
    $region39: #{tpu_custom_call.1} parent=1 // pred_check_branch
      %188 = sbr.rel (0) target = $region41
    $region40: #{tpu_custom_call.1} parent=1 // pred_region
      %190 = dma.done [#allocation4], 256
    $region41: #{tpu_custom_call.1} parent=1 // pred_fallthru
      _
    %191 = vsyncpa [#allocation3], 1
    %192 = vsyncpa [#allocation6], 1
    %193 = vsyncpa [#allocation4], 1

// kernel: tpu_custom_call.1
$region0: #{tpu_custom_call.1}
  #allocation0 [shape = 'u32[]', space=smem, size = 0x4, offset = 0x4, fixed_abs, tag = 'smem constant byte address 0x4 - core index']
  #allocation1 [shape = 'u32[72,128]{1,0:T(1,128)}', space=vmem, size = 0x9000, scoped, tag = 'internal scratch']
  %s0 = inlined_call_operand.hbm [shape: f32[16,128], index: 0, kind: input, shape index: {}]
  %s1 = inlined_call_operand.hbm [shape: f32[1,128], index: 1, kind: input, shape index: {}]
  %s2 = inlined_call_operand.vmem [shape: f32[1,128], index: 2, kind: input, shape index: {}]
  %s3 = inlined_call_operand.hbm [shape: f32[128,128], index: 3, kind: input, shape index: {}]
  %s4 = inlined_call_operand.vmem [shape: f32[1,128], index: 4, kind: input, shape index: {}]
  %s5 = inlined_call_operand.hbm [shape: f32[16,128], index: 5, kind: output, shape index: {}]
  %s6 = sld [smem:[#allocation0]]
  $region42: #{tpu_custom_call.1} parent=0
    _
  %s8 = ssub.s32 1, %s6
  %s9 = scalar_select 0, %s8, %s6
  $region1: #{tpu_custom_call.1} parent=0
    #allocation2 [shape = 'u8[8192]{0}', space=vmem, size = 0x2000, scoped, tag = 'input window, operand 0, single buffered']
    #allocation3 [shape = 's32[1]{0}', space=sflag, size = 0x4, scoped, tag = 'scoped memory for tpu_custom_call.1']
    #allocation4 [shape = 's32[1]{0}', space=sflag, size = 0x4, scoped, tag = 'scoped memory for tpu_custom_call.1']
    #allocation5 [shape = 'u8[512]{0}', space=vmem, size = 0x400, scoped, tag = 'input window, operand 1, single buffered']
    #allocation6 [shape = 's32[1]{0}', space=sflag, size = 0x4, scoped, tag = 'scoped memory for tpu_custom_call.1']
    #allocation7 [shape = 'u8[65536]{0}', space=vmem, size = 0x10000, scoped, tag = 'input window, operand 3, single buffered']
    #allocation8 [shape = 'u8[8192]{0}', space=vmem, size = 0x2000, scoped, tag = 'output window, operand 0, single buffered']
    %10 = vsyncpa [#allocation3], 0
    %11 = vsyncpa [#allocation6], 0
    %12 = vsyncpa [#allocation4], 0
    // Predicated region
    $region2: #{tpu_custom_call.1} parent=1 // pred_check
      _
    $region3: #{tpu_custom_call.1} parent=1 // pred_check_branch
      %14 = sbr.rel (0) target = $region5
    $region4: #{tpu_custom_call.1} parent=1 // pred_region
      %16 = vsyncadd [#allocation3], 0
      %s17 = sshll.u32 %s0, 4
      %s18 = int_to_ptr.hbm [resolvable:$true] %s17
      %s19 = sshll.u32 [#allocation2], 4
      %s20 = int_to_ptr.vmem [resolvable:$true] %s19
      %25 = dma.hbm_to_vmem [thread:$0]  %s18, 256, %s20, [#allocation3], 128, 128, 8
    $region5: #{tpu_custom_call.1} parent=1 // pred_fallthru
      _
    // Predicated region
    $region6: #{tpu_custom_call.1} parent=1 // pred_check
      _
    $region7: #{tpu_custom_call.1} parent=1 // pred_check_branch
      %27 = sbr.rel (0) target = $region9
    $region8: #{tpu_custom_call.1} parent=1 // pred_region
      %29 = vsyncadd [#allocation6], 0
      %s31 = sshll.u32 %s1, 4
      %s32 = int_to_ptr.hbm [resolvable:$true] %s31
      %s33 = sshll.u32 [#allocation5], 4
      %s34 = int_to_ptr.vmem [resolvable:$true] %s33
      %36 = dma.hbm_to_vmem [thread:$0]  %s32, 16, %s34, [#allocation6]
    $region9: #{tpu_custom_call.1} parent=1 // pred_fallthru
      _
    // Predicated region
    $region10: #{tpu_custom_call.1} parent=1 // pred_check
      _
    $region11: #{tpu_custom_call.1} parent=1 // pred_check_branch
      %38 = sbr.rel (0) target = $region13
    $region12: #{tpu_custom_call.1} parent=1 // pred_region
      _
    $region13: #{tpu_custom_call.1} parent=1 // pred_fallthru
      _
    // Predicated region
    $region14: #{tpu_custom_call.1} parent=1 // pred_check
      _
    $region15: #{tpu_custom_call.1} parent=1 // pred_check_branch
      %40 = sbr.rel (0) target = $region17
    $region16: #{tpu_custom_call.1} parent=1 // pred_region
      %42 = vsyncadd [#allocation6], 0
      %s43 = sshll.u32 %s3, 4
      %s44 = int_to_ptr.hbm [resolvable:$true] %s43
      %s45 = sshll.u32 [#allocation7], 4
      %s46 = int_to_ptr.vmem [resolvable:$true] %s45
      %51 = dma.hbm_to_vmem [thread:$0]  %s44, 2048, %s46, [#allocation6], 128, 128, 8
    $region17: #{tpu_custom_call.1} parent=1 // pred_fallthru
      _
    // Predicated region
    $region18: #{tpu_custom_call.1} parent=1 // pred_check
      _
    $region19: #{tpu_custom_call.1} parent=1 // pred_check_branch
      %53 = sbr.rel (0) target = $region21
    $region20: #{tpu_custom_call.1} parent=1 // pred_region
      _
    $region21: #{tpu_custom_call.1} parent=1 // pred_fallthru
      _
    // Predicated region
    $region22: #{tpu_custom_call.1} parent=1 // pred_check
      _
    $region23: #{tpu_custom_call.1} parent=1 // pred_check_branch
      %55 = sbr.rel (0) target = $region25
    $region24: #{tpu_custom_call.1} parent=1 // pred_region
      %57 = dma.done [#allocation3], 256
    $region25: #{tpu_custom_call.1} parent=1 // pred_fallthru
      _
    // Predicated region
    $region26: #{tpu_custom_call.1} parent=1 // pred_check
      _
    $region27: #{tpu_custom_call.1} parent=1 // pred_check_branch
      %59 = sbr.rel (0) target = $region29
    $region28: #{tpu_custom_call.1} parent=1 // pred_region
      %61 = dma.done [#allocation6], 16
    $region29: #{tpu_custom_call.1} parent=1 // pred_fallthru
      _
    // Predicated region
    $region30: #{tpu_custom_call.1} parent=1 // pred_check
      _
    $region31: #{tpu_custom_call.1} parent=1 // pred_check_branch
      %63 = sbr.rel (0) target = $region33
    $region32: #{tpu_custom_call.1} parent=1 // pred_region
      %65 = dma.done [#allocation6], 2048
    $region33: #{tpu_custom_call.1} parent=1 // pred_fallthru
      _
    %v66 = vld [vmem:[#allocation2] sm:$0xff]
    %v67 = vld [vmem:[#allocation2 + $0x8] sm:$0xff]
    %68 = vadd.xlane.f32.xlu0 %v66
    %v69 = vpop.xlane.xlu0 %68
    %70 = vadd.xlane.f32.xlu0 %v67
    %v71 = vpop.xlane.xlu0 %70
    %v72 = vmul.f32 %v69, 0.03125
    %v73 = vmul.f32 %v71, 0.03125
    %v74 = vsub.f32 %v66, %v72
    %v75 = vsub.f32 %v67, %v73
    %v76 = vlaneseq
    %v77 = vand.u32 %v76, 127
    %vm78 = vcmp.lt.s32.totalorder %v77, 32
    %v79 = vsel %vm78, 1, 0
    %vm80 = vcmp.eq.s32.totalorder %v79, 1
    %v81 = vsel %vm80, %v74, 0.0
    %v82 = vsel %vm80, %v75, 0.0
    %v83 = vmul.f32 %v81, %v81
    %v84 = vmul.f32 %v82, %v82
    %85 = vadd.xlane.f32.xlu0 %v83
    %v86 = vpop.xlane.xlu0 %85
    %87 = vadd.xlane.f32.xlu0 %v84
    %v88 = vpop.xlane.xlu0 %87
    %v89 = vmul.f32 %v86, 0.03125
    %v90 = vmul.f32 %v88, 0.03125
    %v91 = vadd.f32 %v89, 1e-05
    %v92 = vadd.f32 %v90, 1e-05
    %v93 = vrsqrt.pop %v91
    %v94 = vmul.f32 %v93, %v91
    %v95 = vmul.f32 %v94, %v93
    %v96 = vmul.f32 0.5, %v95
    %v97 = vsub.f32 1.5, %v96
    %v98 = vmul.f32 %v93, %v97
    %vm99 = vweird.f32 %v91
    %vm100 = vweird.f32 %v93
    %vm101 = vmor %vm99, %vm100
    %v102 = vsel %vm101, %v93, %v98
    %v103 = vrsqrt.pop %v92
    %v104 = vmul.f32 %v103, %v92
    %v105 = vmul.f32 %v104, %v103
    %v106 = vmul.f32 0.5, %v105
    %v107 = vsub.f32 1.5, %v106
    %v108 = vmul.f32 %v103, %v107
    %vm109 = vweird.f32 %v92
    %vm110 = vweird.f32 %v103
    %vm111 = vmor %vm109, %vm110
    %v112 = vsel %vm111, %v103, %v108
    %v113 = vmul.f32 %v81, %v102
    %v114 = vmul.f32 %v82, %v112
    %v115 = vld [vmem:[#allocation5] sm:$0x1]
    %v117 = vperm.slane %v115, 0
    %v119 = vmul.f32 %v113, %v117
    %v120 = vmul.f32 %v114, %v117
    %v121 = vld [vmem:[%s2] sm:$0x1]
    %v123 = vperm.slane %v121, 0
    %v125 = vadd.f32 %v119, %v123
    %v126 = vadd.f32 %v120, %v123
    %v127 = vld [vmem:[#allocation7] sm:$0xff]
    %v128 = vld [vmem:[#allocation7 + $0x8] sm:$0xff]
    %v129 = vld [vmem:[#allocation7 + $0x10] sm:$0xff]
    %v130 = vld [vmem:[#allocation7 + $0x18] sm:$0xff]
    %v131 = vld [vmem:[#allocation7 + $0x20] sm:$0xff]
    %v132 = vld [vmem:[#allocation7 + $0x28] sm:$0xff]
    %v133 = vld [vmem:[#allocation7 + $0x30] sm:$0xff]
    %v134 = vld [vmem:[#allocation7 + $0x38] sm:$0xff]
    %v135 = vld [vmem:[#allocation7 + $0x40] sm:$0xff]
    %v136 = vld [vmem:[#allocation7 + $0x48] sm:$0xff]
    %v137 = vld [vmem:[#allocation7 + $0x50] sm:$0xff]
    %v138 = vld [vmem:[#allocation7 + $0x58] sm:$0xff]
    %v139 = vld [vmem:[#allocation7 + $0x60] sm:$0xff]
    %v140 = vld [vmem:[#allocation7 + $0x68] sm:$0xff]
    %v141 = vld [vmem:[#allocation7 + $0x70] sm:$0xff]
    %v142 = vld [vmem:[#allocation7 + $0x78] sm:$0xff]
    %v143 = vld [vmem:[%s4] sm:$0x1]
    %v145 = vperm.slane %v143, 0
    %147 = vmatpush.msra.mxu0 %v142
    %148 = vmatpush.msra.mxu0 %v141
    %149 = vmatpush.msra.mxu0 %v140
    %150 = vmatpush.msra.mxu0 %v139
    %151 = vmatpush.msra.mxu0 %v138
    %152 = vmatpush.msra.mxu0 %v137
    %153 = vmatpush.msra.mxu0 %v136
    %154 = vmatpush.msra.mxu0 %v135
    %155 = vmatpush.msra.mxu0 %v134
    %156 = vmatpush.msra.mxu0 %v133
    %157 = vmatpush.msra.mxu0 %v132
    %158 = vmatpush.msra.mxu0 %v131
    %159 = vmatpush.msra.mxu0 %v130
    %160 = vmatpush.msra.mxu0 %v129
    %161 = vmatpush.msra.mxu0 %v128
    %162 = vmatpush.msra.mxu0 %v127
    %163 = vmatmul.f32.gmra.mxu0 %v125
    %v164 = vpop.f32.mrf.mxu0
    %v165 = vadd.f32 %v145, %v164
    %166 = vmatmul.f32.gmra.mxu0 %v126
    %v167 = vpop.f32.mrf.mxu0
    %v168 = vadd.f32 %v145, %v167
    %169 = vdwg.mxu0
    %v170 = vmax.f32 %v165, 0.0
    %v171 = vmax.f32 %v168, 0.0
    %172 = vst [vmem:[#allocation8] sm:$0xff] %v170
    %173 = vst [vmem:[#allocation8 + $0x8] sm:$0xff] %v171
    // Predicated region
    $region34: #{tpu_custom_call.1} parent=1 // pred_check
      _
    $region35: #{tpu_custom_call.1} parent=1 // pred_check_branch
      %175 = sbr.rel (0) target = $region37
    $region36: #{tpu_custom_call.1} parent=1 // pred_region
      %177 = vsyncadd [#allocation4], 0
      %s178 = sshll.u32 [#allocation8], 4
      %s179 = int_to_ptr.vmem [resolvable:$true] %s178
      %s180 = sshll.u32 %s5, 4
      %s181 = int_to_ptr.hbm [resolvable:$true] %s180
      %186 = dma.vmem_to_hbm [thread:$0]  %s179, 256, %s181, [#allocation4], 128, 128, 8
    $region37: #{tpu_custom_call.1} parent=1 // pred_fallthru
      _
    // Predicated region
    $region38: #{tpu_custom_call.1} parent=1 // pred_check
      _
    $region39: #{tpu_custom_call.1} parent=1 // pred_check_branch
      %188 = sbr.rel (0) target = $region41
    $region40: #{tpu_custom_call.1} parent=1 // pred_region
      %190 = dma.done [#allocation4], 256
    $region41: #{tpu_custom_call.1} parent=1 // pred_fallthru
      _
    %191 = vsyncpa [#allocation3], 1
    %192 = vsyncpa [#allocation6], 1
    %193 = vsyncpa [#allocation4], 1

</llo_original>
